<compile_context>
chip_gen: v6e
topology: v6e:2x2x1
jax: 0.10.0
libtpu: 0.0.40
codegen_flags: <defaults>
</compile_context>

<pallas_src>
import functools

import jax
import jax.numpy as jnp
from jax.experimental import pallas as pl
from jax.experimental.pallas import tpu as pltpu


def _round_up(x, m):
    return (x + m - 1) // m * m


def mdn_kernel(x_ref, w_ref, b_ref, out_ref, *, n_alp, n_mu):
    # One fused, lane-dense matmul for all three branches. Packed lane layout:
    #   [0, n_alp)                   alpha logits  -> masked softmax
    #   [n_alp, n_alp+n_mu)          mu            -> identity
    #   [n_alp+n_mu, n_alp+2*n_mu)   sigma pre-act -> ReExp = ELU + 1
    #   [n_alp+2*n_mu, N)            zero padding (weight/bias columns are 0)
    x = x_ref[...].astype(w_ref.dtype)   # no-op for f32; enables bf16 weights
    y = jnp.dot(x, w_ref[...], preferred_element_type=jnp.float32) + b_ref[...]

    lane = jax.lax.broadcasted_iota(jnp.int32, y.shape, dimension=1)
    is_alp = lane < n_alp
    is_sig = (lane >= n_alp + n_mu) & (lane < n_alp + 2 * n_mu)

    # --- alpha: masked softmax over the first n_alp lanes ---
    logits = jnp.where(is_alp, y, -1e30)          # masked lanes exp() to exactly 0
    m = jnp.max(logits, axis=-1, keepdims=True)
    e = jnp.exp(logits - m)
    denom = jnp.sum(e, axis=-1, keepdims=True)
    alp = e / denom                               # exact divide: rows sum to 1

    # --- sigma: ReExp(s) = ELU(s) + 1 = where(s > 0, s + 1, exp(s)) ---
    reexp = jnp.where(y > 0, y + 1.0, jnp.exp(y))

    out_ref[...] = jnp.where(is_alp, alp, jnp.where(is_sig, reexp, y))


def pack_mdn_params(params, num_gaus, dim_prob, param_dtype=jnp.float32):
    """Pack the three Linear layers into one tightly-packed, lane-padded (w, b).

    Call ONCE (at init) and reuse every forward: packing writes an (F, N) array
    to HBM.  Use param_dtype=jnp.bfloat16 on v6e/v7x for the native bf16 MXU
    path and half the resident VMEM footprint (bias stays f32).
    """
    wa, ba, wm, bm, ws, bs = params
    F = wa.shape[0]
    G, C = num_gaus, dim_prob
    GC = G * C
    n_real = G + 2 * GC
    N = _round_up(n_real, 128)

    w = jnp.zeros((F, N), param_dtype)
    w = w.at[:, 0:G].set(wa.astype(param_dtype))
    w = w.at[:, G:G + GC].set(wm.astype(param_dtype))
    w = w.at[:, G + GC:n_real].set(ws.astype(param_dtype))

    b = jnp.zeros((1, N), jnp.float32)
    b = b.at[:, 0:G].set(ba.reshape(-1))
    b = b.at[:, G:G + GC].set(bm.reshape(-1))
    b = b.at[:, G + GC:n_real].set(bs.reshape(-1))
    return w, b


def mdn_forward(x, w, b, num_gaus, dim_prob):
    B, F = x.shape
    G, C = num_gaus, dim_prob
    GC = G * C
    N = w.shape[1]
    assert w.shape[0] == F and b.shape == (1, N)

    # --- batch-tile sizing with honest VMEM accounting ----------------------
    # 12 MiB streaming budget keeps the double-buffered x/out tiles inside even
    # v5e's 16 MiB default scoped VMEM; the resident weight + bias (x2: Pallas
    # double-buffers them even though their index_map is constant) is counted.
    x_bytes = x.dtype.itemsize
    w_bytes = jnp.dtype(w.dtype).itemsize
    resident = 2 * (F * N * w_bytes + N * 4)
    stream_budget = 12 * 1024 * 1024
    per_row = 2 * (F * x_bytes + N * 4)          # double-buffered in + out rows (bytes)
    tb = max(8, min((stream_budget - resident) // per_row, 2048))
    tb -= tb % 8
    TB = int(min(tb, _round_up(B, 8)))

    # Pad the batch to a multiple of TB: no ragged last block, all stores unmasked.
    Bp = _round_up(B, TB)
    if Bp != B:
        x = jnp.pad(x, ((0, Bp - B), (0, 0)))
    grid = (Bp // TB,)

    vmem_needed = TB * per_row + resident
    vmem_limit = int(min(max(2 * vmem_needed, 8 << 20), 64 << 20))

    packed = pl.pallas_call(
        functools.partial(mdn_kernel, n_alp=G, n_mu=GC),
        out_shape=jax.ShapeDtypeStruct((Bp, N), jnp.float32),
        grid=grid,
        in_specs=[
            pl.BlockSpec((TB, F), lambda i: (i, 0)),    # streamed activations
            pl.BlockSpec((F, N), lambda i: (0, 0)),     # resident fused weight
            pl.BlockSpec((1, N), lambda i: (0, 0)),     # resident fused bias (f32)
        ],
        out_specs=pl.BlockSpec((TB, N), lambda i: (i, 0)),  # packed lane-dense slab
        compiler_params=pltpu.CompilerParams(
            dimension_semantics=("parallel",),          # shards grid across TCs on v7x
            vmem_limit_bytes=vmem_limit,
        ),
    )(x, w, b)

    alp = packed[:B, 0:G]
    mu = packed[:B, G:G + GC].reshape(B, G, C)
    sigma = packed[:B, G + GC:G + 2 * GC].reshape(B, G, C)
    return alp, mu, sigma


def init_params(key, dim_fea, dim_prob, num_gaus):
    """Deterministic init mimicking nn.Linear's U(-1/sqrt(F), 1/sqrt(F))."""
    F, G, C = dim_fea, num_gaus, dim_prob
    bound = 1.0 / (F ** 0.5)
    ks = jax.random.split(key, 6)
    wa = jax.random.uniform(ks[0], (F, G), jnp.float32, -bound, bound)
    ba = jax.random.uniform(ks[1], (1, G), jnp.float32, -bound, bound)
    wm = jax.random.uniform(ks[2], (F, G * C), jnp.float32, -bound, bound)
    bm = jax.random.uniform(ks[3], (1, G * C), jnp.float32, -bound, bound)
    ws = jax.random.uniform(ks[4], (F, G * C), jnp.float32, -bound, bound)
    bs = jax.random.uniform(ks[5], (1, G * C), jnp.float32, -bound, bound)
    return wa, ba, wm, bm, ws, bs


def mdn_reference(x, params, num_gaus, dim_prob):
    """Pure-JAX reference of the PyTorch forward pass."""
    wa, ba, wm, bm, ws, bs = params
    logits = x @ wa + ba
    alp = jax.nn.softmax(logits, axis=1)
    mu = (x @ wm + bm).reshape(-1, num_gaus, dim_prob)
    s = x @ ws + bs
    sigma = (jnp.where(s > 0, s, jnp.exp(s) - 1.0) + 1.0).reshape(-1, num_gaus, dim_prob)
    return alp, mu, sigma


if __name__ == "__main__":
    # Small shapes consistent with the module: B x F input.
    B, F, G, C = 8, 32, 4, 2   # batch, dim_fea, num_gaus, dim_prob

    key = jax.random.PRNGKey(0)
    kx, kp = jax.random.split(key)
    x = jax.random.normal(kx, (B, F), jnp.float32)
    params = init_params(kp, F, C, G)

    # Pack once (hoisted out of the forward); reuse on every call.
    w, b = pack_mdn_params(params, num_gaus=G, dim_prob=C)

    alp, mu, sigma = mdn_forward(x, w, b, num_gaus=G, dim_prob=C)
    jax.block_until_ready((alp, mu, sigma))

    alp_r, mu_r, sig_r = mdn_reference(x, params, num_gaus=G, dim_prob=C)

    assert alp.shape == (B, G) and mu.shape == (B, G, C) and sigma.shape == (B, G, C)
    # Exact divide in the kernel -> alpha rows sum to 1 to f32 rounding.
    assert jnp.allclose(jnp.sum(alp, axis=-1), jnp.ones((B,)), atol=1e-4)
    # Tolerances allow for MXU default-precision differences between the Pallas dot
    # and the XLA reference matmul on real hardware (interpret mode is exact).
    assert jnp.allclose(alp, alp_r, atol=1e-2, rtol=1e-2)
    assert jnp.allclose(mu, mu_r, atol=1e-2, rtol=1e-2)
    assert jnp.allclose(sigma, sig_r, atol=1e-2, rtol=1e-2)

    print("KERNEL_OK")
</pallas_src>

<mosaic_0001>
module attributes {stable_mosaic.version = 11 : i64} {
  func.func @mdn_kernel(%arg0: i32, %arg1: memref<8x32xf32, #tpu.memory_space<vmem>>, %arg2: memref<32x128xf32, #tpu.memory_space<vmem>>, %arg3: memref<1x128xf32, #tpu.memory_space<vmem>>, %arg4: memref<8x128xf32, #tpu.memory_space<vmem>>) attributes {dimension_semantics = [#tpu.dimension_semantics<parallel>], iteration_bounds = array<i64: 1>, scalar_prefetch = 0 : i64, scratch_operands = 0 : i64, tpu.core_type = #tpu.core_type<tc>, window_params = [{transform_indices = @transform_0, window_bounds = array<i64: 8, 32>}, {pipeline_mode = #tpu.pipeline_mode<synchronous>, transform_indices = @transform_1, window_bounds = array<i64: 32, 128>}, {pipeline_mode = #tpu.pipeline_mode<synchronous>, transform_indices = @transform_2, window_bounds = array<i64: 1, 128>}, {transform_indices = @transform_3, window_bounds = array<i64: 8, 128>}]} {
    %c0 = arith.constant 0 : index
    %c0_0 = arith.constant 0 : index
    %0 = vector.load %arg1[%c0, %c0_0] : memref<8x32xf32, #tpu.memory_space<vmem>>, vector<8x32xf32>
    %c0_1 = arith.constant 0 : index
    %c0_2 = arith.constant 0 : index
    %1 = vector.load %arg2[%c0_1, %c0_2] : memref<32x128xf32, #tpu.memory_space<vmem>>, vector<32x128xf32>
    %cst = arith.constant dense<0.000000e+00> : vector<8x128xf32>
    %2 = tpu.matmul %0, %1, %cst {dimension_numbers = #tpu.dot_dimension_numbers<[1], [0], [0], [1], [0, 0, 1, 1], [], []>} : vector<8x32xf32>, vector<32x128xf32>, vector<8x128xf32> -> vector<8x128xf32>
    %c0_3 = arith.constant 0 : index
    %c0_4 = arith.constant 0 : index
    %3 = vector.load %arg3[%c0_3, %c0_4] : memref<1x128xf32, #tpu.memory_space<vmem>>, vector<1x128xf32>
    %4 = vector.broadcast %3 : vector<1x128xf32> to vector<8x128xf32>
    %5 = arith.addf %2, %4 : vector<8x128xf32>
    %6 = tpu.iota {dimensions = array<i32: 1>} : vector<8x128xi32>
    %c4_i32 = arith.constant 4 : i32
    %7 = vector.broadcast %c4_i32 : i32 to vector<8x128xi32>
    %8 = arith.cmpi slt, %6, %7 : vector<8x128xi32>
    %c12_i32 = arith.constant 12 : i32
    %9 = vector.broadcast %c12_i32 : i32 to vector<8x128xi32>
    %10 = arith.cmpi sge, %6, %9 : vector<8x128xi32>
    %c20_i32 = arith.constant 20 : i32
    %11 = vector.broadcast %c20_i32 : i32 to vector<8x128xi32>
    %12 = arith.cmpi slt, %6, %11 : vector<8x128xi32>
    %13 = arith.andi %10, %12 : vector<8x128xi1>
    %cst_5 = arith.constant -1.000000e+30 : f32
    %14 = vector.broadcast %cst_5 : f32 to vector<8x128xf32>
    %15 = arith.select %8, %5, %14 : vector<8x128xi1>, vector<8x128xf32>
    %cst_6 = arith.constant dense<0xFF800000> : vector<8xf32>
    %16 = vector.multi_reduction <maximumf>, %15, %cst_6 [1] : vector<8x128xf32> to vector<8xf32>
    %17 = vector.shape_cast %16 : vector<8xf32> to vector<8x1xf32>
    %18 = vector.broadcast %17 : vector<8x1xf32> to vector<8x128xf32>
    %19 = arith.subf %15, %18 : vector<8x128xf32>
    %20 = math.exp %19 : vector<8x128xf32>
    %cst_7 = arith.constant dense<0.000000e+00> : vector<8xf32>
    %21 = vector.multi_reduction <add>, %20, %cst_7 [1] : vector<8x128xf32> to vector<8xf32>
    %22 = vector.shape_cast %21 : vector<8xf32> to vector<8x1xf32>
    %23 = vector.broadcast %22 : vector<8x1xf32> to vector<8x128xf32>
    %24 = arith.divf %20, %23 : vector<8x128xf32>
    %cst_8 = arith.constant 0.000000e+00 : f32
    %25 = vector.broadcast %cst_8 : f32 to vector<8x128xf32>
    %26 = arith.cmpf ogt, %5, %25 : vector<8x128xf32>
    %cst_9 = arith.constant 1.000000e+00 : f32
    %27 = vector.broadcast %cst_9 : f32 to vector<8x128xf32>
    %28 = arith.addf %5, %27 : vector<8x128xf32>
    %29 = math.exp %5 : vector<8x128xf32>
    %30 = arith.select %26, %28, %29 : vector<8x128xi1>, vector<8x128xf32>
    %31 = arith.select %13, %30, %5 : vector<8x128xi1>, vector<8x128xf32>
    %32 = arith.select %8, %24, %31 : vector<8x128xi1>, vector<8x128xf32>
    %c0_10 = arith.constant 0 : index
    %c0_11 = arith.constant 0 : index
    %33 = vector.load %arg4[%c0_10, %c0_11] : memref<8x128xf32, #tpu.memory_space<vmem>>, vector<8x128xf32>
    tpu.vector_store %arg4[%c0_10, %c0_11], %32 {strides = array<i32>} : memref<8x128xf32, #tpu.memory_space<vmem>>, vector<8x128xf32>,
    return
  }
  func.func @transform_0(%arg0: i32) -> (i32, i32) {
    %c0_i32 = arith.constant 0 : i32
    %c0_i32_0 = arith.constant 0 : i32
    return %arg0, %c0_i32 : i32, i32
  }
  func.func @transform_1(%arg0: i32) -> (i32, i32) {
    %c0_i32 = arith.constant 0 : i32
    %c0_i32_0 = arith.constant 0 : i32
    %c0_i32_1 = arith.constant 0 : i32
    return %c0_i32, %c0_i32_0 : i32, i32
  }
  func.func @transform_2(%arg0: i32) -> (i32, i32) {
    %c0_i32 = arith.constant 0 : i32
    %c0_i32_0 = arith.constant 0 : i32
    %c0_i32_1 = arith.constant 0 : i32
    return %c0_i32, %c0_i32_0 : i32, i32
  }
  func.func @transform_3(%arg0: i32) -> (i32, i32) {
    %c0_i32 = arith.constant 0 : i32
    %c0_i32_0 = arith.constant 0 : i32
    return %arg0, %c0_i32 : i32, i32
  }
}

</mosaic_0001>

<llo_original>
// kernel: tpu_custom_call.1
$region0: #{tpu_custom_call.1}
  #allocation0 [shape = 'u32[]', space=smem, size = 0x4, offset = 0x4, fixed_abs, tag = 'smem constant byte address 0x4 - core index']
  #allocation1 [shape = 'u32[144,128]{1,0:T(1,128)}', space=vmem, size = 0x12000, scoped, tag = 'internal scratch']
  %s0 = inlined_call_operand.hbm [shape: f32[8,32], index: 0, kind: input, shape index: {}]
  %s1 = inlined_call_operand.hbm [shape: f32[32,128], index: 1, kind: input, shape index: {}]
  %s2 = inlined_call_operand.vmem [shape: f32[1,128], index: 2, kind: input, shape index: {}]
  %s3 = inlined_call_operand.hbm [shape: f32[8,128], index: 3, kind: output, shape index: {}]
  %s4 = sld [smem:[#allocation0]]
  $region30: #{tpu_custom_call.1} parent=0
    _
  %s6 = ssub.s32 1, %s4
  %s7 = scalar_select 0, %s6, %s4
  $region1: #{tpu_custom_call.1} parent=0
    #allocation2 [shape = 'u8[4096]{0}', space=vmem, size = 0x1000, scoped, tag = 'input window, operand 0, single buffered']
    #allocation3 [shape = 's32[1]{0}', space=sflag, size = 0x4, scoped, tag = 'scoped memory for tpu_custom_call.1']
    #allocation4 [shape = 's32[1]{0}', space=sflag, size = 0x4, scoped, tag = 'scoped memory for tpu_custom_call.1']
    #allocation5 [shape = 'u8[16384]{0}', space=vmem, size = 0x4000, scoped, tag = 'input window, operand 1, single buffered']
    #allocation6 [shape = 's32[1]{0}', space=sflag, size = 0x4, scoped, tag = 'scoped memory for tpu_custom_call.1']
    #allocation7 [shape = 'u8[4096]{0}', space=vmem, size = 0x1000, scoped, tag = 'output window, operand 0, single buffered']
    %8 = vsyncpa [#allocation3], 0
    %9 = vsyncpa [#allocation6], 0
    %10 = vsyncpa [#allocation4], 0
    // Predicated region
    $region2: #{tpu_custom_call.1} parent=1 // pred_check
      _
    $region3: #{tpu_custom_call.1} parent=1 // pred_check_branch
      %12 = sbr.rel (0) target = $region5
    $region4: #{tpu_custom_call.1} parent=1 // pred_region
      %s14 = ssub.s32 128, 128
      %15 = vsyncadd [#allocation3], %s14
      %s17 = sshll.u32 [#allocation2], 4
      %s18 = int_to_ptr.vmem [resolvable:$true] %s17
      %20 = dma.hbm_to_vmem [thread:$0]  %s0, 128, %s18, [#allocation3]
    $region5: #{tpu_custom_call.1} parent=1 // pred_fallthru
      _
    // Predicated region
    $region6: #{tpu_custom_call.1} parent=1 // pred_check
      _
    $region7: #{tpu_custom_call.1} parent=1 // pred_check_branch
      %22 = sbr.rel (0) target = $region9
    $region8: #{tpu_custom_call.1} parent=1 // pred_region
      %s24 = ssub.s32 512, 512
      %25 = vsyncadd [#allocation6], %s24
      %s26 = sshll.u32 [#allocation5], 4
      %s27 = int_to_ptr.vmem [resolvable:$true] %s26
      %32 = dma.hbm_to_vmem [thread:$0]  %s1, 512, %s27, [#allocation6], 128, 128, 8
    $region9: #{tpu_custom_call.1} parent=1 // pred_fallthru
      _
    // Predicated region
    $region10: #{tpu_custom_call.1} parent=1 // pred_check
      _
    $region11: #{tpu_custom_call.1} parent=1 // pred_check_branch
      %34 = sbr.rel (0) target = $region13
    $region12: #{tpu_custom_call.1} parent=1 // pred_region
      _
    $region13: #{tpu_custom_call.1} parent=1 // pred_fallthru
      _
    // Predicated region
    $region14: #{tpu_custom_call.1} parent=1 // pred_check
      _
    $region15: #{tpu_custom_call.1} parent=1 // pred_check_branch
      %36 = sbr.rel (0) target = $region17
    $region16: #{tpu_custom_call.1} parent=1 // pred_region
      %37 = dma.done [#allocation3], 128
    $region17: #{tpu_custom_call.1} parent=1 // pred_fallthru
      _
    // Predicated region
    $region18: #{tpu_custom_call.1} parent=1 // pred_check
      _
    $region19: #{tpu_custom_call.1} parent=1 // pred_check_branch
      %39 = sbr.rel (0) target = $region21
    $region20: #{tpu_custom_call.1} parent=1 // pred_region
      %40 = dma.done [#allocation6], 512
    $region21: #{tpu_custom_call.1} parent=1 // pred_fallthru
      _
    %v41 = vld [vmem:[#allocation2] sm:$0xff]
    %v42 = vld [vmem:[#allocation5] sm:$0xff]
    %v43 = vld [vmem:[#allocation5 + $0x8] sm:$0xff]
    %v44 = vld [vmem:[#allocation5 + $0x10] sm:$0xff]
    %v45 = vld [vmem:[#allocation5 + $0x18] sm:$0xff]
    %v46 = vld [vmem:[%s2] sm:$0x1]
    %v48 = vlaneseq
    %v49 = vshrl.u32 %v48, 7
    %v50 = vsub.s32 0, %v49
    %v51 = vrot.slane %v46, %v50
    %vm53 = vcmask 261120
    %v55 = vsel %vm53, %v41, 0
    %57 = vmatprep.subr.mxu0 0.0
    %58 = vmatpush1.msra.mxu0 0.0
    %59 = vmatprep.subr.mxu0 0.0
    %60 = vmatpush1.msra.mxu0 0.0
    %61 = vmatprep.subr.mxu0 0.0
    %62 = vmatpush1.msra.mxu0 0.0
    %63 = vmatprep.subr.mxu0 0.0
    %64 = vmatpush1.msra.mxu0 0.0
    %65 = vmatprep.subr.mxu0 0.0
    %66 = vmatpush1.msra.mxu0 0.0
    %67 = vmatprep.subr.mxu0 0.0
    %68 = vmatpush1.msra.mxu0 0.0
    %69 = vmatprep.subr.mxu0 0.0
    %70 = vmatpush1.msra.mxu0 0.0
    %71 = vmatprep.subr.mxu0 0.0
    %72 = vmatpush1.msra.mxu0 0.0
    %73 = vmatprep.subr.mxu0 0.0
    %74 = vmatpush1.msra.mxu0 0.0
    %75 = vmatprep.subr.mxu0 0.0
    %76 = vmatpush1.msra.mxu0 0.0
    %77 = vmatprep.subr.mxu0 0.0
    %78 = vmatpush1.msra.mxu0 0.0
    %79 = vmatprep.subr.mxu0 0.0
    %80 = vmatpush1.msra.mxu0 0.0
    %81 = vmatprep.subr.mxu0 0.0
    %82 = vmatpush1.msra.mxu0 %v45
    %83 = vmatprep.subr.mxu0 0.0
    %84 = vmatpush1.msra.mxu0 %v44
    %85 = vmatprep.subr.mxu0 0.0
    %86 = vmatpush1.msra.mxu0 %v43
    %87 = vmatprep.subr.mxu0 0.0
    %88 = vmatpush1.msra.mxu0 %v42
    %89 = vmatprep.subr.mxu0 0.0
    %90 = vmatpush2.msra.mxu0 0.0
    %91 = vmatprep.subr.mxu0 0.0
    %92 = vmatpush2.msra.mxu0 0.0
    %93 = vmatprep.subr.mxu0 0.0
    %94 = vmatpush2.msra.mxu0 0.0
    %95 = vmatprep.subr.mxu0 0.0
    %96 = vmatpush2.msra.mxu0 0.0
    %97 = vmatprep.subr.mxu0 0.0
    %98 = vmatpush2.msra.mxu0 0.0
    %99 = vmatprep.subr.mxu0 0.0
    %100 = vmatpush2.msra.mxu0 0.0
    %101 = vmatprep.subr.mxu0 0.0
    %102 = vmatpush2.msra.mxu0 0.0
    %103 = vmatprep.subr.mxu0 0.0
    %104 = vmatpush2.msra.mxu0 0.0
    %105 = vmatprep.subr.mxu0 0.0
    %106 = vmatpush2.msra.mxu0 0.0
    %107 = vmatprep.subr.mxu0 0.0
    %108 = vmatpush2.msra.mxu0 0.0
    %109 = vmatprep.subr.mxu0 0.0
    %110 = vmatpush2.msra.mxu0 0.0
    %111 = vmatprep.subr.mxu0 0.0
    %112 = vmatpush2.msra.mxu0 0.0
    %113 = vmatprep.subr.mxu0 0.0
    %114 = vmatpush2.msra.mxu0 0.0
    %115 = vmatprep.subr.mxu0 0.0
    %116 = vmatpush2.msra.mxu0 0.0
    %117 = vmatprep.subr.mxu0 0.0
    %118 = vmatpush2.msra.mxu0 0.0
    %119 = vmatprep.subr.mxu0 0.0
    %120 = vmatpush2.msra.mxu0 0.0
    %121 = vmatprep.mubr.f32.mxu0 0.0
    %122 = vmatmul.mubr.f32.gmra.mxu0 %v55
    %v123 = vpop.f32.mrf.mxu0
    %v124 = vadd.f32 %v51, %v123
    %v125 = vpop.f32.mrf.mxu0
    %126 = vdwg.mxu0
    %v127 = vlaneseq
    %v128 = vand.u32 %v127, 127
    %vm129 = vcmp.lt.s32.totalorder %v128, 4
    %vm130 = vcmp.ge.s32.totalorder %v128, 12
    %vm131 = vcmp.lt.s32.totalorder %v128, 20
    %vm132 = vmand %vm130, %vm131
    %v133 = vsel %vm129, %v124, -1e+30
    %134 = vmax.xlane.f32.xlu0 %v133
    %v135 = vpop.xlane.xlu0 %134
    %v136 = vsub.f32 %v133, %v135
    %v137 = vmul.f32 %v136, 1.442695
    %v138 = vpow.pop %v137
    %139 = vadd.xlane.f32.xlu0 %v138
    %v140 = vpop.xlane.xlu0 %139
    %v141 = vrcp.pop %v140
    %v142 = vmul.f32 %v138, %v141
    %vm143 = vcmp.gt.f32.partialorder %v124, 0.0
    %v144 = vadd.f32 %v124, 1.0
    %v145 = vmul.f32 %v124, 1.442695
    %v146 = vpow.pop %v145
    %v147 = vsel %vm143, %v144, %v146
    %v148 = vsel %vm132, %v147, %v124
    %v149 = vsel %vm129, %v142, %v148
    %150 = vst [vmem:[#allocation7] sm:$0xff] %v149
    // Predicated region
    $region22: #{tpu_custom_call.1} parent=1 // pred_check
      _
    $region23: #{tpu_custom_call.1} parent=1 // pred_check_branch
      %152 = sbr.rel (0) target = $region25
    $region24: #{tpu_custom_call.1} parent=1 // pred_region
      %s154 = ssub.s32 128, 128
      %155 = vsyncadd [#allocation4], %s154
      %s157 = sshll.u32 [#allocation7], 4
      %s158 = int_to_ptr.vmem [resolvable:$true] %s157
      %160 = dma.vmem_to_hbm [thread:$0]  %s158, 128, %s3, [#allocation4]
    $region25: #{tpu_custom_call.1} parent=1 // pred_fallthru
      _
    // Predicated region
    $region26: #{tpu_custom_call.1} parent=1 // pred_check
      _
    $region27: #{tpu_custom_call.1} parent=1 // pred_check_branch
      %162 = sbr.rel (0) target = $region29
    $region28: #{tpu_custom_call.1} parent=1 // pred_region
      %163 = dma.done [#allocation4], 128
    $region29: #{tpu_custom_call.1} parent=1 // pred_fallthru
      _
    %164 = vsyncpa [#allocation3], 1
    %165 = vsyncpa [#allocation6], 1
    %166 = vsyncpa [#allocation4], 1

</llo_original>
